<compile_context>
chip_gen: v5e
topology: v5e:2x2
jax: 0.10.0
libtpu: 0.0.40
codegen_flags: <defaults>
</compile_context>

<pallas_src>
import functools

import jax
import jax.numpy as jnp
from jax.experimental import pallas as pl
from jax.experimental.pallas import tpu as pltpu

EPS = 1e-5  # nn.InstanceNorm2d default


def _lane_shift(x, k):
    """out[..., p] = x[..., p + k] (wrap-around entries are never selected by callers)."""
    n = x.shape[-1]
    k = k % n
    if k == 0:
        return x
    return jnp.concatenate([x[..., k:], x[..., :k]], axis=-1)


def _conv_in_block(x, w_mat, H, W, masks, use_act):
    """One ConvBlock: 3x3 reflect conv -> InstanceNorm2d(affine=False) -> optional ReLU.

    x:     (Cin, H*W)   activation; channels on sublanes, flattened spatial on lanes.
    w_mat: (Cout, 9*Cin) conv weights, tap-major layout ((dy*3+dx)*Cin + cin).
    Returns f32 (Cout, H*W).
    """
    h_first, h_last, w_first, w_last = masks

    # Vertical (row) taps with reflect boundary: rows[oy][(h,w)] = x[refl(h+oy), w].
    x_dn = _lane_shift(x, W)    # value from the row below:  x[p + W]
    x_up = _lane_shift(x, -W)   # value from the row above:  x[p - W]
    rows = {
        -1: jnp.where(h_first, x_dn, x_up),
        0: x,
        1: jnp.where(h_last, x_up, x_dn),
    }

    # Horizontal (column) taps with reflect boundary, applied to each vertical tap.
    taps = []
    for oy in (-1, 0, 1):
        v = rows[oy]
        v_r = _lane_shift(v, 1)    # v[p + 1]
        v_l = _lane_shift(v, -1)   # v[p - 1]
        taps.append(jnp.where(w_first, v_r, v_l))   # ox = -1
        taps.append(v)                              # ox =  0
        taps.append(jnp.where(w_last, v_l, v_r))    # ox = +1

    patches = jnp.concatenate(taps, axis=0)                              # (9*Cin, H*W)

    # Single im2col matmul on the MXU, f32 accumulation.
    acc = jnp.dot(w_mat, patches, preferred_element_type=jnp.float32)    # (Cout, H*W)

    # InstanceNorm2d(affine=False): biased variance over the spatial (lane) axis.
    mean = jnp.mean(acc, axis=-1, keepdims=True)
    cent = acc - mean
    var = jnp.mean(cent * cent, axis=-1, keepdims=True)
    y = cent * jax.lax.rsqrt(var + EPS)
    if use_act:
        y = jnp.maximum(y, 0.0)
    return y


def _resblock_kernel(x_ref, w1_ref, w2_ref, out_ref, *, H, W):
    """Fused ResBlock for one batch tile.

    x_ref   : (bt, C, H*W)   input activations (flattened spatial on lanes)
    w1_ref  : (C, 9*C)       ConvBlock1 weights (tap-major)
    w2_ref  : (C, 9*C)       ConvBlock2 weights (tap-major)
    out_ref : (bt, C, H*W)   x + Conv2(Conv1(x))
    """
    HW = H * W
    bt = x_ref.shape[0]

    # Per-lane boundary masks for reflect padding of the flattened spatial axis.
    p = jax.lax.broadcasted_iota(jnp.int32, (1, HW), 1)
    h_first = p < W
    h_last = p >= HW - W
    if (W & (W - 1)) == 0:
        w_in_row = jnp.bitwise_and(p, W - 1)
    else:
        # TODO(synk): verify vector int-rem lowering for non-power-of-two W.
        w_in_row = jax.lax.rem(p, W)
    w_first = w_in_row == 0
    w_last = w_in_row == W - 1
    masks = (h_first, h_last, w_first, w_last)

    w1 = w1_ref[...]
    w2 = w2_ref[...]

    for b in range(bt):
        x = x_ref[b]                                               # (C, H*W), native dtype
        h = _conv_in_block(x, w1, H, W, masks, use_act=True)       # f32
        y = _conv_in_block(h, w2.astype(h.dtype), H, W, masks, use_act=False)
        out_ref[b] = (x.astype(jnp.float32) + y).astype(out_ref.dtype)


def res_block_forward(x_nchw, params, *, batch_tile=1):
    """ResBlock.forward: x + Conv2(Conv1(x)); NCHW in/out like PyTorch."""
    N, C, H, W = x_nchw.shape
    assert N % batch_tile == 0, (N, batch_tile)
    HW = H * W

    # Flattened-spatial view; free for contiguous NCHW.
    x_flat = x_nchw.reshape(N, C, HW)

    # PyTorch OIHW weights -> (Cout, 9*Cin) tap-major matrices.
    # Conv biases are intentionally NOT passed: InstanceNorm2d(affine=False)
    # subtracts the per-channel mean right after the conv, cancelling them exactly.
    def to_mat(w_oihw):
        co, ci = w_oihw.shape[0], w_oihw.shape[1]
        return jnp.transpose(w_oihw, (0, 2, 3, 1)).reshape(co, 9 * ci)

    w1m = to_mat(params["w1"])
    w2m = to_mat(params["w2"])
    Cout = w1m.shape[0]

    kernel = functools.partial(_resblock_kernel, H=H, W=W)

    out = pl.pallas_call(
        kernel,
        out_shape=jax.ShapeDtypeStruct((N, Cout, HW), x_nchw.dtype),
        grid=(N // batch_tile,),
        in_specs=[
            pl.BlockSpec((batch_tile, C, HW), lambda n: (n, 0, 0)),
            pl.BlockSpec((Cout, 9 * C), lambda n: (0, 0)),
            pl.BlockSpec((Cout, 9 * C), lambda n: (0, 0)),
        ],
        out_specs=pl.BlockSpec((batch_tile, Cout, HW), lambda n: (n, 0, 0)),
        compiler_params=pltpu.CompilerParams(
            dimension_semantics=("parallel",),   # batch images are independent (v7x 2 TCs)
        ),
    )(x_flat, w1m, w2m)

    return out.reshape(N, Cout, H, W)


# ---------- pure-JAX reference (with conv bias, PyTorch semantics) ----------
def _ref_conv_block(x_nchw, w_oihw, b, use_act):
    xp = jnp.pad(x_nchw, ((0, 0), (0, 0), (1, 1), (1, 1)), mode="reflect")
    y = jax.lax.conv_general_dilated(
        xp, w_oihw, window_strides=(1, 1), padding="VALID",
        dimension_numbers=("NCHW", "OIHW", "NCHW"),
    ) + b.reshape(1, -1, 1, 1)
    mean = jnp.mean(y, axis=(2, 3), keepdims=True)
    var = jnp.mean(jnp.square(y - mean), axis=(2, 3), keepdims=True)
    y = (y - mean) * jax.lax.rsqrt(var + EPS)
    return jnp.maximum(y, 0.0) if use_act else y


def _ref_res_block(x_nchw, params):
    h = _ref_conv_block(x_nchw, params["w1"], params["b1"], True)
    return x_nchw + _ref_conv_block(h, params["w2"], params["b2"], False)


if __name__ == "__main__":
    N, C, H, W = 2, 4, 16, 16  # channels=4

    key = jax.random.PRNGKey(0)
    kx, kw1, kb1, kw2, kb2 = jax.random.split(key, 5)

    x = jax.random.normal(kx, (N, C, H, W), dtype=jnp.float32)

    # Conv2d(channels, channels, 3) parameters in PyTorch OIHW layout (+ bias).
    params = {
        "w1": jax.random.normal(kw1, (C, C, 3, 3), dtype=jnp.float32) * 0.1,
        "b1": jax.random.normal(kb1, (C,), dtype=jnp.float32) * 0.1,
        "w2": jax.random.normal(kw2, (C, C, 3, 3), dtype=jnp.float32) * 0.1,
        "b2": jax.random.normal(kb2, (C,), dtype=jnp.float32) * 0.1,
    }

    out = jax.block_until_ready(res_block_forward(x, params))
    ref = jax.block_until_ready(_ref_res_block(x, params))

    assert out.shape == (N, C, H, W), out.shape
    max_err = float(jnp.max(jnp.abs(out - ref)))
    assert jnp.allclose(out, ref, rtol=1e-4, atol=1e-4), max_err

    print("KERNEL_OK")
</pallas_src>

<mosaic_0001>
module attributes {stable_mosaic.version = 11 : i64} {
  func.func @_resblock_kernel(%arg0: i32, %arg1: memref<1x4x256xf32, #tpu.memory_space<vmem>>, %arg2: memref<4x36xf32, #tpu.memory_space<vmem>>, %arg3: memref<4x36xf32, #tpu.memory_space<vmem>>, %arg4: memref<1x4x256xf32, #tpu.memory_space<vmem>>) attributes {dimension_semantics = [#tpu.dimension_semantics<parallel>], iteration_bounds = array<i64: 2>, scalar_prefetch = 0 : i64, scratch_operands = 0 : i64, tpu.core_type = #tpu.core_type<tc>, window_params = [{transform_indices = @transform_0, window_bounds = array<i64: 1, 4, 256>}, {pipeline_mode = #tpu.pipeline_mode<synchronous>, transform_indices = @transform_1, window_bounds = array<i64: 4, 36>}, {pipeline_mode = #tpu.pipeline_mode<synchronous>, transform_indices = @transform_2, window_bounds = array<i64: 4, 36>}, {transform_indices = @transform_3, window_bounds = array<i64: 1, 4, 256>}]} {
    %0 = tpu.iota {dimensions = array<i32: 1>} : vector<1x256xi32>
    %c16_i32 = arith.constant 16 : i32
    %1 = vector.broadcast %c16_i32 : i32 to vector<1x256xi32>
    %2 = arith.cmpi slt, %0, %1 : vector<1x256xi32>
    %c240_i32 = arith.constant 240 : i32
    %3 = vector.broadcast %c240_i32 : i32 to vector<1x256xi32>
    %4 = arith.cmpi sge, %0, %3 : vector<1x256xi32>
    %c15_i32 = arith.constant 15 : i32
    %5 = vector.broadcast %c15_i32 : i32 to vector<1x256xi32>
    %6 = arith.andi %0, %5 : vector<1x256xi32>
    %c0_i32 = arith.constant 0 : i32
    %7 = vector.broadcast %c0_i32 : i32 to vector<1x256xi32>
    %8 = arith.cmpi eq, %6, %7 : vector<1x256xi32>
    %c15_i32_0 = arith.constant 15 : i32
    %9 = vector.broadcast %c15_i32_0 : i32 to vector<1x256xi32>
    %10 = arith.cmpi eq, %6, %9 : vector<1x256xi32>
    %c0 = arith.constant 0 : index
    %c0_1 = arith.constant 0 : index
    %11 = vector.load %arg2[%c0, %c0_1] : memref<4x36xf32, #tpu.memory_space<vmem>>, vector<4x36xf32>
    %c0_2 = arith.constant 0 : index
    %c0_3 = arith.constant 0 : index
    %12 = vector.load %arg3[%c0_2, %c0_3] : memref<4x36xf32, #tpu.memory_space<vmem>>, vector<4x36xf32>
    %c0_4 = arith.constant 0 : index
    %c0_5 = arith.constant 0 : index
    %c0_6 = arith.constant 0 : index
    %13 = vector.load %arg1[%c0_4, %c0_5, %c0_6] : memref<1x4x256xf32, #tpu.memory_space<vmem>>, vector<1x4x256xf32>
    %14 = vector.shape_cast %13 : vector<1x4x256xf32> to vector<4x256xf32>
    %15 = vector.extract_strided_slice %14 {offsets = [0, 16], sizes = [4, 240], strides = [1, 1]} : vector<4x256xf32> to vector<4x240xf32>
    %16 = vector.extract_strided_slice %14 {offsets = [0, 0], sizes = [4, 16], strides = [1, 1]} : vector<4x256xf32> to vector<4x16xf32>
    %17 = tpu.concatenate %15, %16 in 1 : vector<4x240xf32>, vector<4x16xf32> -> vector<4x256xf32>
    %18 = vector.extract_strided_slice %14 {offsets = [0, 240], sizes = [4, 16], strides = [1, 1]} : vector<4x256xf32> to vector<4x16xf32>
    %19 = vector.extract_strided_slice %14 {offsets = [0, 0], sizes = [4, 240], strides = [1, 1]} : vector<4x256xf32> to vector<4x240xf32>
    %20 = tpu.concatenate %18, %19 in 1 : vector<4x16xf32>, vector<4x240xf32> -> vector<4x256xf32>
    %21 = vector.shape_cast %2 : vector<1x256xi1> to vector<1x256xi1>
    %22 = vector.broadcast %21 : vector<1x256xi1> to vector<4x256xi1>
    %23 = arith.select %22, %17, %20 : vector<4x256xi1>, vector<4x256xf32>
    %24 = vector.shape_cast %4 : vector<1x256xi1> to vector<1x256xi1>
    %25 = vector.broadcast %24 : vector<1x256xi1> to vector<4x256xi1>
    %26 = arith.select %25, %20, %17 : vector<4x256xi1>, vector<4x256xf32>
    %27 = vector.extract_strided_slice %23 {offsets = [0, 1], sizes = [4, 255], strides = [1, 1]} : vector<4x256xf32> to vector<4x255xf32>
    %28 = vector.extract_strided_slice %23 {offsets = [0, 0], sizes = [4, 1], strides = [1, 1]} : vector<4x256xf32> to vector<4x1xf32>
    %29 = tpu.concatenate %27, %28 in 1 : vector<4x255xf32>, vector<4x1xf32> -> vector<4x256xf32>
    %30 = vector.extract_strided_slice %23 {offsets = [0, 255], sizes = [4, 1], strides = [1, 1]} : vector<4x256xf32> to vector<4x1xf32>
    %31 = vector.extract_strided_slice %23 {offsets = [0, 0], sizes = [4, 255], strides = [1, 1]} : vector<4x256xf32> to vector<4x255xf32>
    %32 = tpu.concatenate %30, %31 in 1 : vector<4x1xf32>, vector<4x255xf32> -> vector<4x256xf32>
    %33 = vector.shape_cast %8 : vector<1x256xi1> to vector<1x256xi1>
    %34 = vector.broadcast %33 : vector<1x256xi1> to vector<4x256xi1>
    %35 = arith.select %34, %29, %32 : vector<4x256xi1>, vector<4x256xf32>
    %36 = vector.shape_cast %10 : vector<1x256xi1> to vector<1x256xi1>
    %37 = vector.broadcast %36 : vector<1x256xi1> to vector<4x256xi1>
    %38 = arith.select %37, %32, %29 : vector<4x256xi1>, vector<4x256xf32>
    %39 = vector.extract_strided_slice %14 {offsets = [0, 1], sizes = [4, 255], strides = [1, 1]} : vector<4x256xf32> to vector<4x255xf32>
    %40 = vector.extract_strided_slice %14 {offsets = [0, 0], sizes = [4, 1], strides = [1, 1]} : vector<4x256xf32> to vector<4x1xf32>
    %41 = tpu.concatenate %39, %40 in 1 : vector<4x255xf32>, vector<4x1xf32> -> vector<4x256xf32>
    %42 = vector.extract_strided_slice %14 {offsets = [0, 255], sizes = [4, 1], strides = [1, 1]} : vector<4x256xf32> to vector<4x1xf32>
    %43 = vector.extract_strided_slice %14 {offsets = [0, 0], sizes = [4, 255], strides = [1, 1]} : vector<4x256xf32> to vector<4x255xf32>
    %44 = tpu.concatenate %42, %43 in 1 : vector<4x1xf32>, vector<4x255xf32> -> vector<4x256xf32>
    %45 = vector.shape_cast %8 : vector<1x256xi1> to vector<1x256xi1>
    %46 = vector.broadcast %45 : vector<1x256xi1> to vector<4x256xi1>
    %47 = arith.select %46, %41, %44 : vector<4x256xi1>, vector<4x256xf32>
    %48 = vector.shape_cast %10 : vector<1x256xi1> to vector<1x256xi1>
    %49 = vector.broadcast %48 : vector<1x256xi1> to vector<4x256xi1>
    %50 = arith.select %49, %44, %41 : vector<4x256xi1>, vector<4x256xf32>
    %51 = vector.extract_strided_slice %26 {offsets = [0, 1], sizes = [4, 255], strides = [1, 1]} : vector<4x256xf32> to vector<4x255xf32>
    %52 = vector.extract_strided_slice %26 {offsets = [0, 0], sizes = [4, 1], strides = [1, 1]} : vector<4x256xf32> to vector<4x1xf32>
    %53 = tpu.concatenate %51, %52 in 1 : vector<4x255xf32>, vector<4x1xf32> -> vector<4x256xf32>
    %54 = vector.extract_strided_slice %26 {offsets = [0, 255], sizes = [4, 1], strides = [1, 1]} : vector<4x256xf32> to vector<4x1xf32>
    %55 = vector.extract_strided_slice %26 {offsets = [0, 0], sizes = [4, 255], strides = [1, 1]} : vector<4x256xf32> to vector<4x255xf32>
    %56 = tpu.concatenate %54, %55 in 1 : vector<4x1xf32>, vector<4x255xf32> -> vector<4x256xf32>
    %57 = vector.shape_cast %8 : vector<1x256xi1> to vector<1x256xi1>
    %58 = vector.broadcast %57 : vector<1x256xi1> to vector<4x256xi1>
    %59 = arith.select %58, %53, %56 : vector<4x256xi1>, vector<4x256xf32>
    %60 = vector.shape_cast %10 : vector<1x256xi1> to vector<1x256xi1>
    %61 = vector.broadcast %60 : vector<1x256xi1> to vector<4x256xi1>
    %62 = arith.select %61, %56, %53 : vector<4x256xi1>, vector<4x256xf32>
    %63 = tpu.concatenate %35, %23, %38, %47, %14, %50, %59, %26, %62 in 0 : vector<4x256xf32>, vector<4x256xf32>, vector<4x256xf32>, vector<4x256xf32>, vector<4x256xf32>, vector<4x256xf32>, vector<4x256xf32>, vector<4x256xf32>, vector<4x256xf32> -> vector<36x256xf32>
    %cst = arith.constant dense<0.000000e+00> : vector<4x256xf32>
    %64 = tpu.matmul %11, %63, %cst {dimension_numbers = #tpu.dot_dimension_numbers<[1], [0], [0], [1], [0, 0, 1, 1], [], []>} : vector<4x36xf32>, vector<36x256xf32>, vector<4x256xf32> -> vector<4x256xf32>
    %cst_7 = arith.constant dense<0.000000e+00> : vector<4xf32>
    %65 = vector.multi_reduction <add>, %64, %cst_7 [1] : vector<4x256xf32> to vector<4xf32>
    %66 = vector.shape_cast %65 : vector<4xf32> to vector<4x1xf32>
    %cst_8 = arith.constant 2.560000e+02 : f32
    %67 = vector.broadcast %cst_8 : f32 to vector<4x1xf32>
    %68 = arith.divf %66, %67 : vector<4x1xf32>
    %69 = vector.broadcast %68 : vector<4x1xf32> to vector<4x256xf32>
    %70 = arith.subf %64, %69 : vector<4x256xf32>
    %71 = arith.mulf %70, %70 : vector<4x256xf32>
    %cst_9 = arith.constant dense<0.000000e+00> : vector<4xf32>
    %72 = vector.multi_reduction <add>, %71, %cst_9 [1] : vector<4x256xf32> to vector<4xf32>
    %73 = vector.shape_cast %72 : vector<4xf32> to vector<4x1xf32>
    %cst_10 = arith.constant 2.560000e+02 : f32
    %74 = vector.broadcast %cst_10 : f32 to vector<4x1xf32>
    %75 = arith.divf %73, %74 : vector<4x1xf32>
    %cst_11 = arith.constant 9.99999974E-6 : f32
    %76 = vector.broadcast %cst_11 : f32 to vector<4x1xf32>
    %77 = arith.addf %75, %76 : vector<4x1xf32>
    %78 = math.rsqrt %77 : vector<4x1xf32>
    %79 = vector.broadcast %78 : vector<4x1xf32> to vector<4x256xf32>
    %80 = arith.mulf %70, %79 : vector<4x256xf32>
    %cst_12 = arith.constant 0.000000e+00 : f32
    %81 = vector.broadcast %cst_12 : f32 to vector<4x256xf32>
    %82 = arith.maximumf %80, %81 : vector<4x256xf32>
    %83 = vector.extract_strided_slice %82 {offsets = [0, 16], sizes = [4, 240], strides = [1, 1]} : vector<4x256xf32> to vector<4x240xf32>
    %84 = vector.extract_strided_slice %82 {offsets = [0, 0], sizes = [4, 16], strides = [1, 1]} : vector<4x256xf32> to vector<4x16xf32>
    %85 = tpu.concatenate %83, %84 in 1 : vector<4x240xf32>, vector<4x16xf32> -> vector<4x256xf32>
    %86 = vector.extract_strided_slice %82 {offsets = [0, 240], sizes = [4, 16], strides = [1, 1]} : vector<4x256xf32> to vector<4x16xf32>
    %87 = vector.extract_strided_slice %82 {offsets = [0, 0], sizes = [4, 240], strides = [1, 1]} : vector<4x256xf32> to vector<4x240xf32>
    %88 = tpu.concatenate %86, %87 in 1 : vector<4x16xf32>, vector<4x240xf32> -> vector<4x256xf32>
    %89 = vector.shape_cast %2 : vector<1x256xi1> to vector<1x256xi1>
    %90 = vector.broadcast %89 : vector<1x256xi1> to vector<4x256xi1>
    %91 = arith.select %90, %85, %88 : vector<4x256xi1>, vector<4x256xf32>
    %92 = vector.shape_cast %4 : vector<1x256xi1> to vector<1x256xi1>
    %93 = vector.broadcast %92 : vector<1x256xi1> to vector<4x256xi1>
    %94 = arith.select %93, %88, %85 : vector<4x256xi1>, vector<4x256xf32>
    %95 = vector.extract_strided_slice %91 {offsets = [0, 1], sizes = [4, 255], strides = [1, 1]} : vector<4x256xf32> to vector<4x255xf32>
    %96 = vector.extract_strided_slice %91 {offsets = [0, 0], sizes = [4, 1], strides = [1, 1]} : vector<4x256xf32> to vector<4x1xf32>
    %97 = tpu.concatenate %95, %96 in 1 : vector<4x255xf32>, vector<4x1xf32> -> vector<4x256xf32>
    %98 = vector.extract_strided_slice %91 {offsets = [0, 255], sizes = [4, 1], strides = [1, 1]} : vector<4x256xf32> to vector<4x1xf32>
    %99 = vector.extract_strided_slice %91 {offsets = [0, 0], sizes = [4, 255], strides = [1, 1]} : vector<4x256xf32> to vector<4x255xf32>
    %100 = tpu.concatenate %98, %99 in 1 : vector<4x1xf32>, vector<4x255xf32> -> vector<4x256xf32>
    %101 = vector.shape_cast %8 : vector<1x256xi1> to vector<1x256xi1>
    %102 = vector.broadcast %101 : vector<1x256xi1> to vector<4x256xi1>
    %103 = arith.select %102, %97, %100 : vector<4x256xi1>, vector<4x256xf32>
    %104 = vector.shape_cast %10 : vector<1x256xi1> to vector<1x256xi1>
    %105 = vector.broadcast %104 : vector<1x256xi1> to vector<4x256xi1>
    %106 = arith.select %105, %100, %97 : vector<4x256xi1>, vector<4x256xf32>
    %107 = vector.extract_strided_slice %82 {offsets = [0, 1], sizes = [4, 255], strides = [1, 1]} : vector<4x256xf32> to vector<4x255xf32>
    %108 = vector.extract_strided_slice %82 {offsets = [0, 0], sizes = [4, 1], strides = [1, 1]} : vector<4x256xf32> to vector<4x1xf32>
    %109 = tpu.concatenate %107, %108 in 1 : vector<4x255xf32>, vector<4x1xf32> -> vector<4x256xf32>
    %110 = vector.extract_strided_slice %82 {offsets = [0, 255], sizes = [4, 1], strides = [1, 1]} : vector<4x256xf32> to vector<4x1xf32>
    %111 = vector.extract_strided_slice %82 {offsets = [0, 0], sizes = [4, 255], strides = [1, 1]} : vector<4x256xf32> to vector<4x255xf32>
    %112 = tpu.concatenate %110, %111 in 1 : vector<4x1xf32>, vector<4x255xf32> -> vector<4x256xf32>
    %113 = vector.shape_cast %8 : vector<1x256xi1> to vector<1x256xi1>
    %114 = vector.broadcast %113 : vector<1x256xi1> to vector<4x256xi1>
    %115 = arith.select %114, %109, %112 : vector<4x256xi1>, vector<4x256xf32>
    %116 = vector.shape_cast %10 : vector<1x256xi1> to vector<1x256xi1>
    %117 = vector.broadcast %116 : vector<1x256xi1> to vector<4x256xi1>
    %118 = arith.select %117, %112, %109 : vector<4x256xi1>, vector<4x256xf32>
    %119 = vector.extract_strided_slice %94 {offsets = [0, 1], sizes = [4, 255], strides = [1, 1]} : vector<4x256xf32> to vector<4x255xf32>
    %120 = vector.extract_strided_slice %94 {offsets = [0, 0], sizes = [4, 1], strides = [1, 1]} : vector<4x256xf32> to vector<4x1xf32>
    %121 = tpu.concatenate %119, %120 in 1 : vector<4x255xf32>, vector<4x1xf32> -> vector<4x256xf32>
    %122 = vector.extract_strided_slice %94 {offsets = [0, 255], sizes = [4, 1], strides = [1, 1]} : vector<4x256xf32> to vector<4x1xf32>
    %123 = vector.extract_strided_slice %94 {offsets = [0, 0], sizes = [4, 255], strides = [1, 1]} : vector<4x256xf32> to vector<4x255xf32>
    %124 = tpu.concatenate %122, %123 in 1 : vector<4x1xf32>, vector<4x255xf32> -> vector<4x256xf32>
    %125 = vector.shape_cast %8 : vector<1x256xi1> to vector<1x256xi1>
    %126 = vector.broadcast %125 : vector<1x256xi1> to vector<4x256xi1>
    %127 = arith.select %126, %121, %124 : vector<4x256xi1>, vector<4x256xf32>
    %128 = vector.shape_cast %10 : vector<1x256xi1> to vector<1x256xi1>
    %129 = vector.broadcast %128 : vector<1x256xi1> to vector<4x256xi1>
    %130 = arith.select %129, %124, %121 : vector<4x256xi1>, vector<4x256xf32>
    %131 = tpu.concatenate %103, %91, %106, %115, %82, %118, %127, %94, %130 in 0 : vector<4x256xf32>, vector<4x256xf32>, vector<4x256xf32>, vector<4x256xf32>, vector<4x256xf32>, vector<4x256xf32>, vector<4x256xf32>, vector<4x256xf32>, vector<4x256xf32> -> vector<36x256xf32>
    %cst_13 = arith.constant dense<0.000000e+00> : vector<4x256xf32>
    %132 = tpu.matmul %12, %131, %cst_13 {dimension_numbers = #tpu.dot_dimension_numbers<[1], [0], [0], [1], [0, 0, 1, 1], [], []>} : vector<4x36xf32>, vector<36x256xf32>, vector<4x256xf32> -> vector<4x256xf32>
    %cst_14 = arith.constant dense<0.000000e+00> : vector<4xf32>
    %133 = vector.multi_reduction <add>, %132, %cst_14 [1] : vector<4x256xf32> to vector<4xf32>
    %134 = vector.shape_cast %133 : vector<4xf32> to vector<4x1xf32>
    %cst_15 = arith.constant 2.560000e+02 : f32
    %135 = vector.broadcast %cst_15 : f32 to vector<4x1xf32>
    %136 = arith.divf %134, %135 : vector<4x1xf32>
    %137 = vector.broadcast %136 : vector<4x1xf32> to vector<4x256xf32>
    %138 = arith.subf %132, %137 : vector<4x256xf32>
    %139 = arith.mulf %138, %138 : vector<4x256xf32>
    %cst_16 = arith.constant dense<0.000000e+00> : vector<4xf32>
    %140 = vector.multi_reduction <add>, %139, %cst_16 [1] : vector<4x256xf32> to vector<4xf32>
    %141 = vector.shape_cast %140 : vector<4xf32> to vector<4x1xf32>
    %cst_17 = arith.constant 2.560000e+02 : f32
    %142 = vector.broadcast %cst_17 : f32 to vector<4x1xf32>
    %143 = arith.divf %141, %142 : vector<4x1xf32>
    %cst_18 = arith.constant 9.99999974E-6 : f32
    %144 = vector.broadcast %cst_18 : f32 to vector<4x1xf32>
    %145 = arith.addf %143, %144 : vector<4x1xf32>
    %146 = math.rsqrt %145 : vector<4x1xf32>
    %147 = vector.broadcast %146 : vector<4x1xf32> to vector<4x256xf32>
    %148 = arith.mulf %138, %147 : vector<4x256xf32>
    %149 = arith.addf %14, %148 : vector<4x256xf32>
    %c0_19 = arith.constant 0 : index
    %c0_20 = arith.constant 0 : index
    %c0_21 = arith.constant 0 : index
    %150 = vector.load %arg4[%c0_19, %c0_20, %c0_21] : memref<1x4x256xf32, #tpu.memory_space<vmem>>, vector<1x4x256xf32>
    %151 = vector.shape_cast %150 : vector<1x4x256xf32> to vector<4x256xf32>
    %152 = vector.shape_cast %149 : vector<4x256xf32> to vector<1x4x256xf32>
    tpu.vector_store %arg4[%c0_19, %c0_20, %c0_21], %152 {strides = array<i32>} : memref<1x4x256xf32, #tpu.memory_space<vmem>>, vector<1x4x256xf32>,
    return
  }
  func.func @transform_0(%arg0: i32) -> (i32, i32, i32) {
    %c0_i32 = arith.constant 0 : i32
    %c0_i32_0 = arith.constant 0 : i32
    %c0_i32_1 = arith.constant 0 : i32
    return %arg0, %c0_i32, %c0_i32_0 : i32, i32, i32
  }
  func.func @transform_1(%arg0: i32) -> (i32, i32) {
    %c0_i32 = arith.constant 0 : i32
    %c0_i32_0 = arith.constant 0 : i32
    %c0_i32_1 = arith.constant 0 : i32
    return %c0_i32, %c0_i32_0 : i32, i32
  }
  func.func @transform_2(%arg0: i32) -> (i32, i32) {
    %c0_i32 = arith.constant 0 : i32
    %c0_i32_0 = arith.constant 0 : i32
    %c0_i32_1 = arith.constant 0 : i32
    return %c0_i32, %c0_i32_0 : i32, i32
  }
  func.func @transform_3(%arg0: i32) -> (i32, i32, i32) {
    %c0_i32 = arith.constant 0 : i32
    %c0_i32_0 = arith.constant 0 : i32
    %c0_i32_1 = arith.constant 0 : i32
    return %arg0, %c0_i32, %c0_i32_0 : i32, i32, i32
  }
}

</mosaic_0001>

<llo_original>
// kernel: tpu_custom_call.1
$region0: #{tpu_custom_call.1}
  #allocation0 [shape = 'u32[]', space=smem, size = 0x4, offset = 0x4, fixed_abs, tag = 'smem constant byte address 0x4 - core index']
  #allocation1 [shape = 'u32[72,128]{1,0:T(1,128)}', space=vmem, size = 0x9000, scoped, tag = 'internal scratch']
  %s0 = inlined_call_operand.hbm [shape: f32[2,4,256], index: 0, kind: input, shape index: {}]
  %s1 = inlined_call_operand.hbm [shape: f32[4,36], index: 1, kind: input, shape index: {}]
  %s2 = inlined_call_operand.hbm [shape: f32[4,36], index: 2, kind: input, shape index: {}]
  %s3 = inlined_call_operand.hbm [shape: f32[2,4,256], index: 3, kind: output, shape index: {}]
  %s4 = sld [smem:[#allocation0]]
  $region57: #{tpu_custom_call.1} parent=0
    _
  %s6 = ssub.s32 1, %s4
  %s7 = scalar_select 0, %s6, %s4
  $region1: #{tpu_custom_call.1} parent=0
    #allocation2 [shape = 'u8[8192]{0}', space=vmem, size = 0x2000, scoped, tag = 'input window, operand 0']
    #allocation3 [shape = 's32[2]{0}', space=sflag, size = 0x8, scoped, tag = 'scoped memory for tpu_custom_call.1']
    #allocation4 [shape = 's32[2]{0}', space=sflag, size = 0x8, scoped, tag = 'scoped memory for tpu_custom_call.1']
    #allocation5 [shape = 'u8[2048]{0}', space=vmem, size = 0x800, scoped, tag = 'input window, operand 1, single buffered']
    #allocation6 [shape = 's32[1]{0}', space=sflag, size = 0x4, scoped, tag = 'scoped memory for tpu_custom_call.1']
    #allocation7 [shape = 'u8[2048]{0}', space=vmem, size = 0x800, scoped, tag = 'input window, operand 2, single buffered']
    #allocation8 [shape = 'u8[8192]{0}', space=vmem, size = 0x2000, scoped, tag = 'output window, operand 0']
    %8 = vsyncpa [#allocation3], 0
    %s9 = scalar_lea.sflag [#allocation3], 1
    %10 = vsyncpa %s9, 0
    %11 = vsyncpa [#allocation6], 0
    %12 = vsyncpa [#allocation4], 0
    %s13 = scalar_lea.sflag [#allocation4], 1
    %14 = vsyncpa %s13, 0
    loop: start=0, step=1, limit=4
    $region2: #{tpu_custom_call.1} parent=1 // loop_pre_header
      _
    $region3: #{tpu_custom_call.1} parent=1 // loop_header
      %s16 = sphi 0, %s20
      %p17 = scmp.ge.s32.totalorder %s16, 4
      %s26 = sphi 0, %s28
      %s29 = sphi 0, %s26
      %s30 = sphi 0, %s29
      %s46 = sphi 0, %s30
      %s50 = sphi 0, %s50
      %s52 = sphi 0, %s50
      %s53 = sphi 0, %s52
      %s67 = sphi 0, %s53
      %s71 = sphi 0, %s71
      %s73 = sphi 0, %s71
      %s74 = sphi 0, %s73
      %s88 = sphi 0, %s74
      %s94 = sphi 0, %s96
      %s97 = sphi 0, %s94
      %s98 = sphi 0, %s97
      %s114 = sphi 0, %s98
    $region4: #{tpu_custom_call.1} parent=1 // loop_header_branch
      %19 = sbr.rel (%p17) target = $region8
    $region5: #{tpu_custom_call.1} parent=1 // loop_body
      %s21 = ssub.s32 %s16, 1
      %s22 = ssub.s32 %s16, 2
      %s23 = sadd.s32 %s16, 1
      %s24 = ssub.s32 %s16, %s23
      %p25 = scmp.eq.s32.totalorder %s24, 0
      %s27 = sadd.s32 %s26, 1
      %s28 = scalar_select %p25, %s26, %s27
      %p31 = pneg %p25
      %p32 = scmp.eq.s32.totalorder %s16, 1
      %p33 = por %p31, %p32
      %p34 = scmp.ne.s32.totalorder %s26, %s29
      %p35 = scmp.eq.s32.totalorder %s16, 0
      %p36 = por %p34, %p35
      %p37 = scmp.ne.s32.totalorder %s26, %s29
      %p38 = scmp.eq.s32.totalorder %s21, 1
      %p39 = por %p37, %p38
      %p40 = scmp.ne.s32.totalorder %s29, %s30
      %p41 = scmp.eq.s32.totalorder %s21, 0
      %p42 = por %p40, %p41
      %p43 = scmp.ne.s32.totalorder %s29, %s30
      %p44 = scmp.eq.s32.totalorder %s22, 1
      %p45 = por %p43, %p44
      %p47 = scmp.ne.s32.totalorder %s30, %s46
      %p48 = scmp.eq.s32.totalorder %s22, 0
      %p49 = por %p47, %p48
      %s51 = sadd.s32 %s50, 1
      %p54 = scmp.eq.s32.totalorder %s16, 1
      %p55 = scmp.ne.s32.totalorder %s50, %s52
      %p56 = scmp.eq.s32.totalorder %s16, 0
      %p57 = por %p55, %p56
      %p58 = scmp.ne.s32.totalorder %s50, %s52
      %p59 = scmp.eq.s32.totalorder %s21, 1
      %p60 = por %p58, %p59
      %p61 = scmp.ne.s32.totalorder %s52, %s53
      %p62 = scmp.eq.s32.totalorder %s21, 0
      %p63 = por %p61, %p62
      %p64 = scmp.ne.s32.totalorder %s52, %s53
      %p65 = scmp.eq.s32.totalorder %s22, 1
      %p66 = por %p64, %p65
      %p68 = scmp.ne.s32.totalorder %s53, %s67
      %p69 = scmp.eq.s32.totalorder %s22, 0
      %p70 = por %p68, %p69
      %s72 = sadd.s32 %s71, 1
      %p75 = scmp.eq.s32.totalorder %s16, 1
      %p76 = scmp.ne.s32.totalorder %s71, %s73
      %p77 = scmp.eq.s32.totalorder %s16, 0
      %p78 = por %p76, %p77
      %p79 = scmp.ne.s32.totalorder %s71, %s73
      %p80 = scmp.eq.s32.totalorder %s21, 1
      %p81 = por %p79, %p80
      %p82 = scmp.ne.s32.totalorder %s73, %s74
      %p83 = scmp.eq.s32.totalorder %s21, 0
      %p84 = por %p82, %p83
      %p85 = scmp.ne.s32.totalorder %s73, %s74
      %p86 = scmp.eq.s32.totalorder %s22, 1
      %p87 = por %p85, %p86
      %p89 = scmp.ne.s32.totalorder %s74, %s88
      %p90 = scmp.eq.s32.totalorder %s22, 0
      %p91 = por %p89, %p90
      %s92 = ssub.s32 %s16, %s23
      %p93 = scmp.eq.s32.totalorder %s92, 0
      %s95 = sadd.s32 %s94, 1
      %s96 = scalar_select %p93, %s94, %s95
      %p99 = pneg %p93
      %p100 = scmp.eq.s32.totalorder %s16, 1
      %p101 = por %p99, %p100
      %p102 = scmp.ne.s32.totalorder %s94, %s97
      %p103 = scmp.eq.s32.totalorder %s16, 0
      %p104 = por %p102, %p103
      %p105 = scmp.ne.s32.totalorder %s94, %s97
      %p106 = scmp.eq.s32.totalorder %s21, 1
      %p107 = por %p105, %p106
      %p108 = scmp.ne.s32.totalorder %s97, %s98
      %p109 = scmp.eq.s32.totalorder %s21, 0
      %p110 = por %p108, %p109
      %p111 = scmp.ne.s32.totalorder %s97, %s98
      %p112 = scmp.eq.s32.totalorder %s22, 1
      %p113 = por %p111, %p112
      %p115 = scmp.ne.s32.totalorder %s98, %s114
      %p116 = scmp.eq.s32.totalorder %s22, 0
      %p117 = por %p115, %p116
      %p118 = scmp.le.s32.totalorder 1, %s16
      %p119 = scmp.lt.s32.totalorder %s16, 3
      %p120 = pnand %p118, %p119
      %p121 = pneg %p120
      // Predicated region
      $region9: #{tpu_custom_call.1} parent=5 // pred_check
        _
      $region10: #{tpu_custom_call.1} parent=5 // pred_check_branch
        %123 = sbr.rel (%p120) target = $region12
      $region11: #{tpu_custom_call.1} parent=5 // pred_region
        %s124 = ssub.s32 %s16, 1
        // Predicated region
        $region13: #{tpu_custom_call.1} parent=11 // pred_check
          %p125 = pneg %p63
        $region14: #{tpu_custom_call.1} parent=11 // pred_check_branch
          %127 = sbr.rel (%p125) target = $region16
        $region15: #{tpu_custom_call.1} parent=11 // pred_region
          %129 = vsyncadd [#allocation6], 0
          %s131 = sshll.u32 %s1, 4
          %s132 = int_to_ptr.hbm [resolvable:$true] %s131
          %s133 = sshll.u32 [#allocation5], 4
          %s134 = int_to_ptr.vmem [resolvable:$true] %s133
          %136 = dma.hbm_to_vmem [thread:$0]  %s132, 64, %s134, [#allocation6]
        $region16: #{tpu_custom_call.1} parent=11 // pred_fallthru
          _
        // Predicated region
        $region17: #{tpu_custom_call.1} parent=11 // pred_check
          %p137 = pneg %p84
        $region18: #{tpu_custom_call.1} parent=11 // pred_check_branch
          %139 = sbr.rel (%p137) target = $region20
        $region19: #{tpu_custom_call.1} parent=11 // pred_region
          %141 = vsyncadd [#allocation6], 0
          %s143 = sshll.u32 %s2, 4
          %s144 = int_to_ptr.hbm [resolvable:$true] %s143
          %s145 = sshll.u32 [#allocation7], 4
          %s146 = int_to_ptr.vmem [resolvable:$true] %s145
          %148 = dma.hbm_to_vmem [thread:$0]  %s144, 64, %s146, [#allocation6]
        $region20: #{tpu_custom_call.1} parent=11 // pred_fallthru
          _
      $region12: #{tpu_custom_call.1} parent=5 // pred_fallthru
        _
      %p149 = scmp.lt.s32.totalorder %s16, 2
      // Predicated region
      $region21: #{tpu_custom_call.1} parent=5 // pred_check
        %p150 = pneg %p149
      $region22: #{tpu_custom_call.1} parent=5 // pred_check_branch
        %152 = sbr.rel (%p150) target = $region24
      $region23: #{tpu_custom_call.1} parent=5 // pred_region
        // Predicated region
        $region25: #{tpu_custom_call.1} parent=23 // pred_check
          %p153 = pneg %p36
        $region26: #{tpu_custom_call.1} parent=23 // pred_check_branch
          %155 = sbr.rel (%p153) target = $region28
        $region27: #{tpu_custom_call.1} parent=23 // pred_region
          %s156 = sand.u32 %s26, 1
          %s157 = scalar_lea.sflag [#allocation3], %s156
          %s158 = sand.u32 %s26, 1
          %s159 = smul.addr %s158, 8
          %s160 = scalar_lea.vmem [#allocation2], %s159
          %162 = vsyncadd %s157, 0
          %s163 = smul.addr %s16, 2
          %s164 = smul.addr %s163, 4
          %s165 = scalar_lea.hbm %s0, %s164
          %s167 = sshll.u32 %s165, 4
          %s168 = int_to_ptr.hbm [resolvable:$true] %s167
          %s169 = sshll.u32 %s160, 4
          %s170 = int_to_ptr.vmem [resolvable:$true] %s169
          %172 = dma.hbm_to_vmem [thread:$0]  %s168, 128, %s170, %s157
        $region28: #{tpu_custom_call.1} parent=23 // pred_fallthru
          _
      $region24: #{tpu_custom_call.1} parent=5 // pred_fallthru
        _
      %p173 = scmp.le.s32.totalorder 1, %s16
      %p174 = scmp.lt.s32.totalorder %s16, 3
      %p175 = pnand %p173, %p174
      %p176 = pneg %p175
      // Predicated region
      $region29: #{tpu_custom_call.1} parent=5 // pred_check
        _
      $region30: #{tpu_custom_call.1} parent=5 // pred_check_branch
        %178 = sbr.rel (%p175) target = $region32
      $region31: #{tpu_custom_call.1} parent=5 // pred_region
        %s179 = ssub.s32 %s16, 1
        %s180 = sand.u32 %s29, 1
        %s181 = scalar_lea.sflag [#allocation3], %s180
        %s182 = sand.u32 %s29, 1
        %s183 = smul.addr %s182, 8
        %s184 = scalar_lea.vmem [#allocation2], %s183
        // Predicated region
        $region33: #{tpu_custom_call.1} parent=31 // pred_check
          %p185 = pneg %p42
        $region34: #{tpu_custom_call.1} parent=31 // pred_check_branch
          %187 = sbr.rel (%p185) target = $region36
        $region35: #{tpu_custom_call.1} parent=31 // pred_region
          %189 = dma.done %s181, 128
        $region36: #{tpu_custom_call.1} parent=31 // pred_fallthru
          _
        // Predicated region
        $region37: #{tpu_custom_call.1} parent=31 // pred_check
          %p190 = pneg %p63
        $region38: #{tpu_custom_call.1} parent=31 // pred_check_branch
          %192 = sbr.rel (%p190) target = $region40
        $region39: #{tpu_custom_call.1} parent=31 // pred_region
          %194 = dma.done [#allocation6], 64
        $region40: #{tpu_custom_call.1} parent=31 // pred_fallthru
          _
        // Predicated region
        $region41: #{tpu_custom_call.1} parent=31 // pred_check
          %p195 = pneg %p84
        $region42: #{tpu_custom_call.1} parent=31 // pred_check_branch
          %197 = sbr.rel (%p195) target = $region44
        $region43: #{tpu_custom_call.1} parent=31 // pred_region
          %199 = dma.done [#allocation6], 64
        $region44: #{tpu_custom_call.1} parent=31 // pred_fallthru
          _
        %s200 = sand.u32 %s29, 1
        %s201 = scalar_lea.sflag [#allocation3], %s200
        %s202 = sand.u32 %s29, 1
        %s203 = smul.addr %s202, 8
        %s204 = scalar_lea.vmem [#allocation2], %s203
        %p205 = pneg %p42
        %p206 = pneg %p39
        %p207 = pneg %p63
        %p208 = pneg %p60
        %p209 = pneg %p84
        %p210 = pneg %p81
        %p211 = pneg %p110
        %p212 = pneg %p107
        %s213 = sand.u32 %s97, 1
        %s214 = scalar_lea.sflag [#allocation4], %s213
        %s215 = sand.u32 %s97, 1
        %s216 = smul.addr %s215, 8
        %s217 = scalar_lea.vmem [#allocation8], %s216
        %v218 = vlaneseq
        %v219 = vand.u32 %v218, 127
        %v220 = vadd.s32 %v219, 128
        %vm221 = vcmp.lt.s32.totalorder %v219, 16
        %vm222 = vcmp.lt.s32.totalorder %v220, 16
        %vm223 = vcmp.ge.s32.totalorder %v219, 240
        %vm224 = vcmp.ge.s32.totalorder %v220, 240
        %v225 = vand.u32 %v219, 15
        %v226 = vand.u32 %v220, 15
        %vm227 = vcmp.eq.s32.totalorder %v225, 0
        %vm228 = vcmp.eq.s32.totalorder %v226, 0
        %vm229 = vcmp.eq.s32.totalorder %v225, 15
        %vm230 = vcmp.eq.s32.totalorder %v226, 15
        %v231 = vld [vmem:[#allocation5] sm:$0xf]
        %v232 = vld [vmem:[#allocation7] sm:$0xf]
        %v233 = vld [vmem:[%s184] sm:$0xff]
        %235 = vst [vmem:[#allocation1] ss:$2 sm:$0xff] %v233
        %v236 = vld.sshfl [vmem:[#allocation1] sm:$0xff pattern:$0x75316420]
        %v237 = vld.sshfl [vmem:[#allocation1 + $0x8] sm:$0xff pattern:$0x75316420]
        %238 = vrot.lane.b32.xlu0 %v236, 112
        %v239 = vpop.permute.xlu0 %238
        %240 = vrot.lane.b32.xlu0 %v237, 112
        %v241 = vpop.permute.xlu0 %240
        %vm242 = vcmask 916480
        %v243 = vsel %vm242, %v239, %v241
        %246 = vst [vmem:[#allocation1] ss:$2 sm:$0xff] %v233
        %v247 = vld.sshfl [vmem:[#allocation1] sm:$0xff pattern:$0x75316420]
        %248 = vrot.lane.b32.xlu0 %v247, 112
        %v249 = vpop.permute.xlu0 %248
        %v251 = vsel %vm242, %v241, %v249
        %252 = vst [vmem:[#allocation1] ss:$2 sm:$0xff] %v233
        %v253 = vld.sshfl [vmem:[#allocation1 + $0x8] sm:$0xff pattern:$0x75316420]
        %254 = vrot.lane.b32.xlu0 %v253, 16
        %v255 = vpop.permute.xlu0 %254
        %257 = vst [vmem:[#allocation1] ss:$2 sm:$0xff] %v233
        %v258 = vld.sshfl [vmem:[#allocation1] sm:$0xff pattern:$0x75316420]
        %v259 = vld.sshfl [vmem:[#allocation1 + $0x8] sm:$0xff pattern:$0x75316420]
        %260 = vrot.lane.b32.xlu0 %v258, 16
        %v261 = vpop.permute.xlu0 %260
        %262 = vrot.lane.b32.xlu0 %v259, 16
        %v263 = vpop.permute.xlu0 %262
        %vm264 = vcmask 130048
        %v265 = vsel %vm264, %v261, %v263
        %v268 = vsel %vm264, %v255, %v261
        %v269 = vsel %vm221, 1, 0
        %v270 = vsel %vm222, 1, 0
        %vm271 = vcmp.eq.s32.totalorder %v269, 1
        %vm272 = vcmp.eq.s32.totalorder %v270, 1
        %v273 = vsel %vm271, %v243, %v268
        %v274 = vsel %vm272, %v251, %v265
        %v275 = vsel %vm223, 1, 0
        %v276 = vsel %vm224, 1, 0
        %vm277 = vcmp.eq.s32.totalorder %v275, 1
        %vm278 = vcmp.eq.s32.totalorder %v276, 1
        %v279 = vsel %vm277, %v268, %v243
        %v280 = vsel %vm278, %v265, %v251
        %283 = vrot.lane.b32.xlu0 %v273, 127
        %v284 = vpop.permute.xlu0 %283
        %285 = vrot.lane.b32.xlu0 %v274, 127
        %v286 = vpop.permute.xlu0 %285
        %vm287 = vcmask 1039360
        %v288 = vsel %vm287, %v284, %v286
        %v292 = vsel %vm287, %v286, %v284
        %293 = vrot.lane.b32.xlu0 %v274, 1
        %v294 = vpop.permute.xlu0 %293
        %296 = vrot.lane.b32.xlu0 %v273, 1
        %v297 = vpop.permute.xlu0 %296
        %vm298 = vcmask 7168
        %v299 = vsel %vm298, %v297, %v294
        %v302 = vsel %vm298, %v294, %v297
        %v303 = vsel %vm227, 1, 0
        %v304 = vsel %vm228, 1, 0
        %vm305 = vcmp.eq.s32.totalorder %v303, 1
        %vm306 = vcmp.eq.s32.totalorder %v304, 1
        %v307 = vsel %vm305, %v288, %v302
        %v308 = vsel %vm306, %v292, %v299
        %v309 = vsel %vm229, 1, 0
        %v310 = vsel %vm230, 1, 0
        %vm311 = vcmp.eq.s32.totalorder %v309, 1
        %vm312 = vcmp.eq.s32.totalorder %v310, 1
        %v313 = vsel %vm311, %v302, %v288
        %v314 = vsel %vm312, %v299, %v292
        %315 = vst [vmem:[#allocation1] ss:$2 sm:$0xff] %v233
        %v316 = vld.sshfl [vmem:[#allocation1] sm:$0xff pattern:$0x75316420]
        %v317 = vld.sshfl [vmem:[#allocation1 + $0x8] sm:$0xff pattern:$0x75316420]
        %318 = vrot.lane.b32.xlu0 %v316, 127
        %v319 = vpop.permute.xlu0 %318
        %320 = vrot.lane.b32.xlu0 %v317, 127
        %v321 = vpop.permute.xlu0 %320
        %v322 = vsel %vm287, %v319, %v321
        %325 = vst [vmem:[#allocation1] ss:$2 sm:$0xff] %v233
        %v326 = vld.sshfl [vmem:[#allocation1] sm:$0xff pattern:$0x75316420]
        %327 = vrot.lane.b32.xlu0 %v326, 127
        %v328 = vpop.permute.xlu0 %327
        %v330 = vsel %vm287, %v321, %v328
        %331 = vst [vmem:[#allocation1] ss:$2 sm:$0xff] %v233
        %v332 = vld.sshfl [vmem:[#allocation1 + $0x8] sm:$0xff pattern:$0x75316420]
        %333 = vrot.lane.b32.xlu0 %v332, 1
        %v334 = vpop.permute.xlu0 %333
        %336 = vst [vmem:[#allocation1] ss:$2 sm:$0xff] %v233
        %v337 = vld.sshfl [vmem:[#allocation1] sm:$0xff pattern:$0x75316420]
        %v338 = vld.sshfl [vmem:[#allocation1 + $0x8] sm:$0xff pattern:$0x75316420]
        %339 = vrot.lane.b32.xlu0 %v337, 1
        %v340 = vpop.permute.xlu0 %339
        %341 = vrot.lane.b32.xlu0 %v338, 1
        %v342 = vpop.permute.xlu0 %341
        %v343 = vsel %vm298, %v340, %v342
        %v346 = vsel %vm298, %v334, %v340
        %v347 = vsel %vm305, %v322, %v346
        %v348 = vsel %vm306, %v330, %v343
        %v349 = vsel %vm311, %v346, %v322
        %v350 = vsel %vm312, %v343, %v330
        %353 = vrot.lane.b32.xlu0 %v279, 127
        %v354 = vpop.permute.xlu0 %353
        %355 = vrot.lane.b32.xlu0 %v280, 127
        %v356 = vpop.permute.xlu0 %355
        %v357 = vsel %vm287, %v354, %v356
        %v361 = vsel %vm287, %v356, %v354
        %362 = vrot.lane.b32.xlu0 %v280, 1
        %v363 = vpop.permute.xlu0 %362
        %365 = vrot.lane.b32.xlu0 %v279, 1
        %v366 = vpop.permute.xlu0 %365
        %v367 = vsel %vm298, %v366, %v363
        %v370 = vsel %vm298, %v363, %v366
        %v371 = vsel %vm305, %v357, %v370
        %v372 = vsel %vm306, %v361, %v367
        %v373 = vsel %vm311, %v370, %v357
        %v374 = vsel %vm312, %v367, %v361
        %v375 = vrot.slane %v273, 4
        %v376 = vrot.slane %v274, 4
        %v381 = vrot.slane %v347, 4
        %v382 = vrot.slane %v348, 4
        %385 = vst [vmem:[#allocation1] ss:$2 sm:$0xff] %v233
        %v386 = vld.sshfl [vmem:[#allocation1] sm:$0xff pattern:$0x75316420]
        %v387 = vld.sshfl [vmem:[#allocation1 + $0x8] sm:$0xff pattern:$0x75316420]
        %v392 = vrot.slane %v349, 4
        %v393 = vrot.slane %v350, 4
        %v396 = vrot.slane %v279, 4
        %v397 = vrot.slane %v280, 4
        %vm400 = vcmask 1043456
        %v401 = vsel %vm400, %v307, %v375
        %v402 = vsel %vm400, %v308, %v376
        %v403 = vsel %vm400, %v313, %v381
        %v404 = vsel %vm400, %v314, %v382
        %v405 = vsel %vm400, %v386, %v392
        %v406 = vsel %vm400, %v387, %v393
        %v407 = vsel %vm400, %v371, %v396
        %v408 = vsel %vm400, %v372, %v397
        %vm409 = vcmask 293888
        %v411 = vsel %vm409, %v231, 0
        %v414 = vsel %vm400, %v373, 0
        %v417 = vsel %vm400, %v374, 0
        %419 = vmatpush.msra.mxu0 0.0
        %420 = vmatpush.msra.mxu0 0.0
        %421 = vmatpush.msra.mxu0 0.0
        %422 = vmatpush.msra.mxu0 0.0
        %423 = vmatpush.msra.mxu0 0.0
        %424 = vmatpush.msra.mxu0 0.0
        %425 = vmatpush.msra.mxu0 0.0
        %426 = vmatpush.msra.mxu0 0.0
        %427 = vmatpush.msra.mxu0 0.0
        %428 = vmatpush.msra.mxu0 0.0
        %429 = vmatpush.msra.mxu0 0.0
        %430 = vmatpush.msra.mxu0 %v414
        %431 = vmatpush.msra.mxu0 %v407
        %432 = vmatpush.msra.mxu0 %v405
        %433 = vmatpush.msra.mxu0 %v403
        %434 = vmatpush.msra.mxu0 %v401
        %435 = vmatmul.f32.gmra.mxu0 %v411
        %v436 = vpop.f32.mrf.mxu0
        %v437 = vadd.f32 0.0, %v436
        %438 = vdwg.mxu0
        %439 = vmatpush.msra.mxu0 0.0
        %440 = vmatpush.msra.mxu0 0.0
        %441 = vmatpush.msra.mxu0 0.0
        %442 = vmatpush.msra.mxu0 0.0
        %443 = vmatpush.msra.mxu0 0.0
        %444 = vmatpush.msra.mxu0 0.0
        %445 = vmatpush.msra.mxu0 0.0
        %446 = vmatpush.msra.mxu0 0.0
        %447 = vmatpush.msra.mxu0 0.0
        %448 = vmatpush.msra.mxu0 0.0
        %449 = vmatpush.msra.mxu0 0.0
        %450 = vmatpush.msra.mxu0 %v417
        %451 = vmatpush.msra.mxu0 %v408
        %452 = vmatpush.msra.mxu0 %v406
        %453 = vmatpush.msra.mxu0 %v404
        %454 = vmatpush.msra.mxu0 %v402
        %455 = vmatmul.f32.gmra.mxu0 %v411
        %v456 = vpop.f32.mrf.mxu0
        %v457 = vadd.f32 0.0, %v456
        %458 = vdwg.mxu0
        %v459 = vsel %vm400, %v437, 0.0
        %v460 = vsel %vm400, %v457, 0.0
        %v461 = vadd.f32 %v459, %v460
        %462 = vadd.xlane.f32.xlu0 %v461
        %v463 = vpop.xlane.xlu0 %462
        %v464 = vrcp.pop 256.0
        %v465 = vmul.f32 256.0, %v464
        %v466 = vsub.f32 1.0, %v465
        %v467 = vmul.f32 %v464, %v466
        %v468 = vadd.f32 %v464, %v467
        %vm469 = vweird.f32 %v464
        %v470 = vsel %vm469, %v464, %v468
        %v471 = vmul.f32 %v463, %v470
        %v472 = vsub.f32 %v437, %v471
        %v473 = vsub.f32 %v457, %v471
        %v474 = vmul.f32 %v472, %v472
        %v475 = vmul.f32 %v473, %v473
        %v476 = vsel %vm400, %v474, 0.0
        %v477 = vsel %vm400, %v475, 0.0
        %v478 = vadd.f32 %v476, %v477
        %479 = vadd.xlane.f32.xlu0 %v478
        %v480 = vpop.xlane.xlu0 %479
        %v481 = vmul.f32 %v480, %v470
        %v482 = vadd.f32 %v481, 1e-05
        %v483 = vrsqrt.pop %v482
        %v484 = vmul.f32 %v483, %v482
        %v485 = vmul.f32 %v484, %v483
        %v486 = vmul.f32 0.5, %v485
        %v487 = vsub.f32 1.5, %v486
        %v488 = vmul.f32 %v483, %v487
        %vm489 = vweird.f32 %v482
        %vm490 = vweird.f32 %v483
        %vm491 = vmor %vm489, %vm490
        %v492 = vsel %vm491, %v483, %v488
        %v493 = vmul.f32 %v472, %v492
        %v494 = vmul.f32 %v473, %v492
        %v495 = vmax.f32 %v493, 0.0
        %v496 = vmax.f32 %v494, 0.0
        %499 = vrot.lane.b32.xlu0 %v495, 112
        %v500 = vpop.permute.xlu0 %499
        %501 = vrot.lane.b32.xlu0 %v496, 112
        %v502 = vpop.permute.xlu0 %501
        %v503 = vsel %vm242, %v500, %v502
        %v507 = vsel %vm242, %v502, %v500
        %508 = vrot.lane.b32.xlu0 %v496, 16
        %v509 = vpop.permute.xlu0 %508
        %511 = vrot.lane.b32.xlu0 %v495, 16
        %v512 = vpop.permute.xlu0 %511
        %v513 = vsel %vm264, %v512, %v509
        %v516 = vsel %vm264, %v509, %v512
        %v517 = vsel %vm271, %v503, %v516
        %v518 = vsel %vm272, %v507, %v513
        %v519 = vsel %vm277, %v516, %v503
        %v520 = vsel %vm278, %v513, %v507
        %523 = vrot.lane.b32.xlu0 %v517, 127
        %v524 = vpop.permute.xlu0 %523
        %525 = vrot.lane.b32.xlu0 %v518, 127
        %v526 = vpop.permute.xlu0 %525
        %v527 = vsel %vm287, %v524, %v526
        %v531 = vsel %vm287, %v526, %v524
        %532 = vrot.lane.b32.xlu0 %v518, 1
        %v533 = vpop.permute.xlu0 %532
        %535 = vrot.lane.b32.xlu0 %v517, 1
        %v536 = vpop.permute.xlu0 %535
        %v537 = vsel %vm298, %v536, %v533
        %v540 = vsel %vm298, %v533, %v536
        %v541 = vsel %vm305, %v527, %v540
        %v542 = vsel %vm306, %v531, %v537
        %v543 = vsel %vm311, %v540, %v527
        %v544 = vsel %vm312, %v537, %v531
        %545 = vrot.lane.b32.xlu0 %v495, 127
        %v546 = vpop.permute.xlu0 %545
        %547 = vrot.lane.b32.xlu0 %v496, 127
        %v548 = vpop.permute.xlu0 %547
        %v549 = vsel %vm287, %v546, %v548
        %v553 = vsel %vm287, %v548, %v546
        %554 = vrot.lane.b32.xlu0 %v496, 1
        %v555 = vpop.permute.xlu0 %554
        %557 = vrot.lane.b32.xlu0 %v495, 1
        %v558 = vpop.permute.xlu0 %557
        %v559 = vsel %vm298, %v558, %v555
        %v562 = vsel %vm298, %v555, %v558
        %v563 = vsel %vm305, %v549, %v562
        %v564 = vsel %vm306, %v553, %v559
        %v565 = vsel %vm311, %v562, %v549
        %v566 = vsel %vm312, %v559, %v553
        %569 = vrot.lane.b32.xlu0 %v519, 127
        %v570 = vpop.permute.xlu0 %569
        %571 = vrot.lane.b32.xlu0 %v520, 127
        %v572 = vpop.permute.xlu0 %571
        %v573 = vsel %vm287, %v570, %v572
        %v577 = vsel %vm287, %v572, %v570
        %578 = vrot.lane.b32.xlu0 %v520, 1
        %v579 = vpop.permute.xlu0 %578
        %581 = vrot.lane.b32.xlu0 %v519, 1
        %v582 = vpop.permute.xlu0 %581
        %v583 = vsel %vm298, %v582, %v579
        %v586 = vsel %vm298, %v579, %v582
        %v587 = vsel %vm305, %v573, %v586
        %v588 = vsel %vm306, %v577, %v583
        %v589 = vsel %vm311, %v586, %v573
        %v590 = vsel %vm312, %v583, %v577
        %v591 = vrot.slane %v517, 4
        %v592 = vrot.slane %v518, 4
        %v597 = vrot.slane %v563, 4
        %v598 = vrot.slane %v564, 4
        %v603 = vrot.slane %v565, 4
        %v604 = vrot.slane %v566, 4
        %v607 = vrot.slane %v519, 4
        %v608 = vrot.slane %v520, 4
        %v611 = vsel %vm400, %v541, %v591
        %v612 = vsel %vm400, %v542, %v592
        %v613 = vsel %vm400, %v543, %v597
        %v614 = vsel %vm400, %v544, %v598
        %v615 = vsel %vm400, %v495, %v603
        %v616 = vsel %vm400, %v496, %v604
        %v617 = vsel %vm400, %v587, %v607
        %v618 = vsel %vm400, %v588, %v608
        %v620 = vsel %vm409, %v232, 0
        %v623 = vsel %vm400, %v589, 0
        %v626 = vsel %vm400, %v590, 0
        %628 = vmatpush.msra.mxu0 0.0
        %629 = vmatpush.msra.mxu0 0.0
        %630 = vmatpush.msra.mxu0 0.0
        %631 = vmatpush.msra.mxu0 0.0
        %632 = vmatpush.msra.mxu0 0.0
        %633 = vmatpush.msra.mxu0 0.0
        %634 = vmatpush.msra.mxu0 0.0
        %635 = vmatpush.msra.mxu0 0.0
        %636 = vmatpush.msra.mxu0 0.0
        %637 = vmatpush.msra.mxu0 0.0
        %638 = vmatpush.msra.mxu0 0.0
        %639 = vmatpush.msra.mxu0 %v623
        %640 = vmatpush.msra.mxu0 %v617
        %641 = vmatpush.msra.mxu0 %v615
        %642 = vmatpush.msra.mxu0 %v613
        %643 = vmatpush.msra.mxu0 %v611
        %644 = vmatmul.f32.gmra.mxu0 %v620
        %v645 = vpop.f32.mrf.mxu0
        %v646 = vadd.f32 0.0, %v645
        %647 = vdwg.mxu0
        %648 = vmatpush.msra.mxu0 0.0
        %649 = vmatpush.msra.mxu0 0.0
        %650 = vmatpush.msra.mxu0 0.0
        %651 = vmatpush.msra.mxu0 0.0
        %652 = vmatpush.msra.mxu0 0.0
        %653 = vmatpush.msra.mxu0 0.0
        %654 = vmatpush.msra.mxu0 0.0
        %655 = vmatpush.msra.mxu0 0.0
        %656 = vmatpush.msra.mxu0 0.0
        %657 = vmatpush.msra.mxu0 0.0
        %658 = vmatpush.msra.mxu0 0.0
        %659 = vmatpush.msra.mxu0 %v626
        %660 = vmatpush.msra.mxu0 %v618
        %661 = vmatpush.msra.mxu0 %v616
        %662 = vmatpush.msra.mxu0 %v614
        %663 = vmatpush.msra.mxu0 %v612
        %664 = vmatmul.f32.gmra.mxu0 %v620
        %v665 = vpop.f32.mrf.mxu0
        %v666 = vadd.f32 0.0, %v665
        %667 = vdwg.mxu0
        %v668 = vsel %vm400, %v646, 0.0
        %v669 = vsel %vm400, %v666, 0.0
        %v670 = vadd.f32 %v668, %v669
        %671 = vadd.xlane.f32.xlu0 %v670
        %v672 = vpop.xlane.xlu0 %671
        %v673 = vmul.f32 %v672, %v470
        %v674 = vsub.f32 %v646, %v673
        %v675 = vsub.f32 %v666, %v673
        %v676 = vmul.f32 %v674, %v674
        %v677 = vmul.f32 %v675, %v675
        %v678 = vsel %vm400, %v676, 0.0
        %v679 = vsel %vm400, %v677, 0.0
        %v680 = vadd.f32 %v678, %v679
        %681 = vadd.xlane.f32.xlu0 %v680
        %v682 = vpop.xlane.xlu0 %681
        %v683 = vmul.f32 %v682, %v470
        %v684 = vadd.f32 %v683, 1e-05
        %v685 = vrsqrt.pop %v684
        %v686 = vmul.f32 %v685, %v684
        %v687 = vmul.f32 %v686, %v685
        %v688 = vmul.f32 0.5, %v687
        %v689 = vsub.f32 1.5, %v688
        %v690 = vmul.f32 %v685, %v689
        %vm691 = vweird.f32 %v684
        %vm692 = vweird.f32 %v685
        %vm693 = vmor %vm691, %vm692
        %v694 = vsel %vm693, %v685, %v690
        %v695 = vmul.f32 %v674, %v694
        %v696 = vmul.f32 %v675, %v694
        %v699 = vrot.slane %v696, 4
        %v700 = vsel %vm400, %v695, %v699
        %v702 = vadd.f32 %v233, %v700
        %703 = vst [vmem:[%s217] sm:$0xff] %v702
        %s704 = sand.u32 %s97, 1
        %s705 = scalar_lea.sflag [#allocation4], %s704
        %s706 = sand.u32 %s97, 1
        %s707 = smul.addr %s706, 8
        %s708 = scalar_lea.vmem [#allocation8], %s707
        // Predicated region
        $region45: #{tpu_custom_call.1} parent=31 // pred_check
          %p709 = pneg %p107
        $region46: #{tpu_custom_call.1} parent=31 // pred_check_branch
          %711 = sbr.rel (%p709) target = $region48
        $region47: #{tpu_custom_call.1} parent=31 // pred_region
          %713 = vsyncadd %s705, 0
          %s714 = smul.addr %s21, 2
          %s715 = smul.addr %s714, 4
          %s716 = scalar_lea.hbm %s3, %s715
          %s718 = sshll.u32 %s708, 4
          %s719 = int_to_ptr.vmem [resolvable:$true] %s718
          %s720 = sshll.u32 %s716, 4
          %s721 = int_to_ptr.hbm [resolvable:$true] %s720
          %723 = dma.vmem_to_hbm [thread:$0]  %s719, 128, %s721, %s705
        $region48: #{tpu_custom_call.1} parent=31 // pred_fallthru
          _
      $region32: #{tpu_custom_call.1} parent=5 // pred_fallthru
        _
      %p724 = scmp.le.s32.totalorder 2, %s16
      // Predicated region
      $region49: #{tpu_custom_call.1} parent=5 // pred_check
        %p725 = pneg %p724
      $region50: #{tpu_custom_call.1} parent=5 // pred_check_branch
        %727 = sbr.rel (%p725) target = $region52
      $region51: #{tpu_custom_call.1} parent=5 // pred_region
        %s728 = ssub.s32 %s16, 2
        // Predicated region
        $region53: #{tpu_custom_call.1} parent=51 // pred_check
          %p729 = pneg %p113
        $region54: #{tpu_custom_call.1} parent=51 // pred_check_branch
          %731 = sbr.rel (%p729) target = $region56
        $region55: #{tpu_custom_call.1} parent=51 // pred_region
          %s732 = sand.u32 %s98, 1
          %s733 = scalar_lea.sflag [#allocation4], %s732
          %s734 = sand.u32 %s98, 1
          %s735 = smul.addr %s734, 8
          %s736 = scalar_lea.vmem [#allocation8], %s735
          %738 = dma.done %s733, 128
        $region56: #{tpu_custom_call.1} parent=51 // pred_fallthru
          _
      $region52: #{tpu_custom_call.1} parent=5 // pred_fallthru
        _
    $region6: #{tpu_custom_call.1} parent=1 // loop_footer
      %s20 = sadd.s32 1, %s16
    $region7: #{tpu_custom_call.1} parent=1 // loop_footer_branch
      %15 = sbr.rel target = $region3
    $region8: #{tpu_custom_call.1} parent=1 // loop_exit
      _
    %739 = vsyncpa [#allocation3], 1
    %s740 = scalar_lea.sflag [#allocation3], 1
    %741 = vsyncpa %s740, 1
    %742 = vsyncpa [#allocation6], 1
    %743 = vsyncpa [#allocation4], 1
    %s744 = scalar_lea.sflag [#allocation4], 1
    %745 = vsyncpa %s744, 1

</llo_original>
